<compile_context>
chip_gen: v6e
topology: v6e:2x2x1
jax: 0.10.0
libtpu: 0.0.40
codegen_flags: <defaults>
</compile_context>

<pallas_src>
import jax
import jax.numpy as jnp
from jax.experimental import pallas as pl
from jax.experimental.pallas import tpu as pltpu

NUM_HIDDEN = 10


def healthnet_kernel(p_ref, x_ref, o_ref):
    # p_ref: (31,) f32 in SMEM: [0:10]=fc1.w, [10:20]=fc1.b, [20:30]=fc2.w, [30]=fc2.b
    x = x_ref[...]                                            # (TR, 128) f32
    acc = jnp.full(x.shape, p_ref[3 * NUM_HIDDEN], dtype=jnp.float32)
    for j in range(NUM_HIDDEN):                               # static unroll -> pure VPU
        w1j = p_ref[j]
        b1j = p_ref[NUM_HIDDEN + j]
        w2j = p_ref[2 * NUM_HIDDEN + j]
        acc = acc + w2j * jnp.maximum(w1j * x + b1j, 0.0)
    o_ref[...] = acc.astype(o_ref.dtype)                      # dense unmasked store


def _round_up(n, m):
    return ((n + m - 1) // m) * m


def healthnet_forward(x, w1, b1, w2, b2, *, tile_rows=2048, min_pallas_batch=16384):
    """x: (B, 1). PyTorch layouts: w1 (10,1), b1 (10,), w2 (1,10), b2 (1,)."""
    B = x.shape[0]

    if B < min_pallas_batch:
        # Small batch: kernel launch + relayout dwarf the ~40 flops/row; let XLA fuse.
        h = jnp.maximum(x @ w1.T + b1, 0.0)
        return h @ w2.T + b2

    # Pack the 31 parameter scalars into one flat f32 vector (prefetched to SMEM).
    params = jnp.concatenate(
        [w1.reshape(NUM_HIDDEN), b1.reshape(NUM_HIDDEN),
         w2.reshape(NUM_HIDDEN), b2.reshape(1)]
    ).astype(jnp.float32)

    # Dense 2D relayout: (B, 1) -> (rows, 128). Free reshape when B % 128 == 0;
    # otherwise one small pad of the flat vector up to the next lane multiple.
    x_flat = x.reshape(B).astype(jnp.float32)
    b_pad = _round_up(B, 128)
    if b_pad != B:
        x_flat = jnp.pad(x_flat, (0, b_pad - B))
    rows = b_pad // 128
    x2d = x_flat.reshape(rows, 128)

    # Block rows: multiple of 8, capped at tile_rows. Partial trailing block is
    # fine: OOB reads are unused garbage, OOB writes are dropped by Pallas.
    tr = min(tile_rows, _round_up(rows, 8))
    n_tiles = pl.cdiv(rows, tr)

    n_elems = rows * 128
    cost = pl.CostEstimate(
        flops=5 * NUM_HIDDEN * n_elems,       # ~50 flops / element
        transcendentals=0,
        bytes_accessed=2 * 4 * n_elems + 4 * params.size,
    )

    y2d = pl.pallas_call(
        healthnet_kernel,
        out_shape=jax.ShapeDtypeStruct((rows, 128), jnp.float32),
        grid_spec=pltpu.PrefetchScalarGridSpec(
            num_scalar_prefetch=1,
            grid=(n_tiles,),
            in_specs=[pl.BlockSpec((tr, 128), lambda i, p: (i, 0))],
            out_specs=pl.BlockSpec((tr, 128), lambda i, p: (i, 0)),
        ),
        compiler_params=pltpu.CompilerParams(
            dimension_semantics=("parallel",),
        ),
        cost_estimate=cost,
    )(params, x2d)

    y_flat = y2d.reshape(b_pad)
    if b_pad != B:
        y_flat = y_flat[:B]
    return y_flat.reshape(B, 1)


def init_params(key):
    # PyTorch nn.Linear default init: uniform(-1/sqrt(fan_in), +1/sqrt(fan_in)).
    k1, k2, k3, k4 = jax.random.split(key, 4)
    bound1 = 1.0                      # fc1: in_features = 1
    bound2 = 1.0 / jnp.sqrt(10.0)     # fc2: in_features = 10
    w1 = jax.random.uniform(k1, (10, 1), jnp.float32, -bound1, bound1)  # fc1.weight
    b1 = jax.random.uniform(k2, (10,), jnp.float32, -bound1, bound1)    # fc1.bias
    w2 = jax.random.uniform(k3, (1, 10), jnp.float32, -bound2, bound2)  # fc2.weight
    b2 = jax.random.uniform(k4, (1,), jnp.float32, -bound2, bound2)     # fc2.bias
    return w1, b1, w2, b2


def _ref_forward(x, w1, b1, w2, b2):
    return jnp.maximum(x @ w1.T + b1, 0.0) @ w2.T + b2


if __name__ == "__main__":
    key = jax.random.PRNGKey(0)
    kx, kp = jax.random.split(key)
    w1, b1, w2, b2 = init_params(kp)

    # 1) Pallas path (forced), B a multiple of 128 -> zero-copy relayout, single block.
    B = 4096
    x = jax.random.normal(kx, (B, 1), dtype=jnp.float32)
    out = jax.block_until_ready(
        healthnet_forward(x, w1, b1, w2, b2, min_pallas_batch=0))
    ref = _ref_forward(x, w1, b1, w2, b2)
    assert out.shape == (B, 1)
    assert jnp.allclose(out, ref, atol=1e-5, rtol=1e-5)

    # 2) Awkward batch: lane padding + multi-step grid + partial trailing row block
    #    (verifies OOB writes are dropped, per correctness review).
    B2 = 1500
    x2 = jax.random.normal(jax.random.PRNGKey(1), (B2, 1), dtype=jnp.float32)
    out2 = jax.block_until_ready(
        healthnet_forward(x2, w1, b1, w2, b2, tile_rows=8, min_pallas_batch=0))
    ref2 = _ref_forward(x2, w1, b1, w2, b2)
    assert out2.shape == (B2, 1)
    assert jnp.allclose(out2, ref2, atol=1e-5, rtol=1e-5)

    # 3) Tiny batch: XLA fallback path (kernel not worth launching at this size).
    x3 = x[:8]
    out3 = jax.block_until_ready(healthnet_forward(x3, w1, b1, w2, b2))
    assert jnp.allclose(out3, _ref_forward(x3, w1, b1, w2, b2), atol=1e-5, rtol=1e-5)

    print("KERNEL_OK")
</pallas_src>

<mosaic_0001>
module attributes {stable_mosaic.version = 11 : i64} {
  func.func @healthnet_kernel(%arg0: i32, %arg1: memref<31xf32, #tpu.memory_space<smem>>, %arg2: memref<32x128xf32, #tpu.memory_space<vmem>>, %arg3: memref<32x128xf32, #tpu.memory_space<vmem>>) attributes {dimension_semantics = [#tpu.dimension_semantics<parallel>], iteration_bounds = array<i64: 1>, scalar_prefetch = 1 : i64, scratch_operands = 0 : i64, tpu.core_type = #tpu.core_type<tc>, window_params = [{transform_indices = @transform_0, window_bounds = array<i64: 32, 128>}, {transform_indices = @transform_1, window_bounds = array<i64: 32, 128>}]} {
    %c0 = arith.constant 0 : index
    %c0_0 = arith.constant 0 : index
    %0 = vector.load %arg2[%c0, %c0_0] : memref<32x128xf32, #tpu.memory_space<vmem>>, vector<32x128xf32>
    %c30 = arith.constant 30 : index
    %1 = memref.load %arg1[%c30] : memref<31xf32, #tpu.memory_space<smem>>
    %2 = vector.broadcast %1 : f32 to vector<32x128xf32>
    %c0_1 = arith.constant 0 : index
    %3 = memref.load %arg1[%c0_1] : memref<31xf32, #tpu.memory_space<smem>>
    %c10 = arith.constant 10 : index
    %4 = memref.load %arg1[%c10] : memref<31xf32, #tpu.memory_space<smem>>
    %c20 = arith.constant 20 : index
    %5 = memref.load %arg1[%c20] : memref<31xf32, #tpu.memory_space<smem>>
    %6 = vector.broadcast %3 : f32 to vector<32x128xf32>
    %7 = arith.mulf %6, %0 : vector<32x128xf32>
    %8 = vector.broadcast %4 : f32 to vector<32x128xf32>
    %9 = arith.addf %7, %8 : vector<32x128xf32>
    %cst = arith.constant 0.000000e+00 : f32
    %10 = vector.broadcast %cst : f32 to vector<32x128xf32>
    %11 = arith.maximumf %9, %10 : vector<32x128xf32>
    %12 = vector.broadcast %5 : f32 to vector<32x128xf32>
    %13 = arith.mulf %12, %11 : vector<32x128xf32>
    %14 = arith.addf %2, %13 : vector<32x128xf32>
    %c1 = arith.constant 1 : index
    %15 = memref.load %arg1[%c1] : memref<31xf32, #tpu.memory_space<smem>>
    %c11 = arith.constant 11 : index
    %16 = memref.load %arg1[%c11] : memref<31xf32, #tpu.memory_space<smem>>
    %c21 = arith.constant 21 : index
    %17 = memref.load %arg1[%c21] : memref<31xf32, #tpu.memory_space<smem>>
    %18 = vector.broadcast %15 : f32 to vector<32x128xf32>
    %19 = arith.mulf %18, %0 : vector<32x128xf32>
    %20 = vector.broadcast %16 : f32 to vector<32x128xf32>
    %21 = arith.addf %19, %20 : vector<32x128xf32>
    %cst_2 = arith.constant 0.000000e+00 : f32
    %22 = vector.broadcast %cst_2 : f32 to vector<32x128xf32>
    %23 = arith.maximumf %21, %22 : vector<32x128xf32>
    %24 = vector.broadcast %17 : f32 to vector<32x128xf32>
    %25 = arith.mulf %24, %23 : vector<32x128xf32>
    %26 = arith.addf %14, %25 : vector<32x128xf32>
    %c2 = arith.constant 2 : index
    %27 = memref.load %arg1[%c2] : memref<31xf32, #tpu.memory_space<smem>>
    %c12 = arith.constant 12 : index
    %28 = memref.load %arg1[%c12] : memref<31xf32, #tpu.memory_space<smem>>
    %c22 = arith.constant 22 : index
    %29 = memref.load %arg1[%c22] : memref<31xf32, #tpu.memory_space<smem>>
    %30 = vector.broadcast %27 : f32 to vector<32x128xf32>
    %31 = arith.mulf %30, %0 : vector<32x128xf32>
    %32 = vector.broadcast %28 : f32 to vector<32x128xf32>
    %33 = arith.addf %31, %32 : vector<32x128xf32>
    %cst_3 = arith.constant 0.000000e+00 : f32
    %34 = vector.broadcast %cst_3 : f32 to vector<32x128xf32>
    %35 = arith.maximumf %33, %34 : vector<32x128xf32>
    %36 = vector.broadcast %29 : f32 to vector<32x128xf32>
    %37 = arith.mulf %36, %35 : vector<32x128xf32>
    %38 = arith.addf %26, %37 : vector<32x128xf32>
    %c3 = arith.constant 3 : index
    %39 = memref.load %arg1[%c3] : memref<31xf32, #tpu.memory_space<smem>>
    %c13 = arith.constant 13 : index
    %40 = memref.load %arg1[%c13] : memref<31xf32, #tpu.memory_space<smem>>
    %c23 = arith.constant 23 : index
    %41 = memref.load %arg1[%c23] : memref<31xf32, #tpu.memory_space<smem>>
    %42 = vector.broadcast %39 : f32 to vector<32x128xf32>
    %43 = arith.mulf %42, %0 : vector<32x128xf32>
    %44 = vector.broadcast %40 : f32 to vector<32x128xf32>
    %45 = arith.addf %43, %44 : vector<32x128xf32>
    %cst_4 = arith.constant 0.000000e+00 : f32
    %46 = vector.broadcast %cst_4 : f32 to vector<32x128xf32>
    %47 = arith.maximumf %45, %46 : vector<32x128xf32>
    %48 = vector.broadcast %41 : f32 to vector<32x128xf32>
    %49 = arith.mulf %48, %47 : vector<32x128xf32>
    %50 = arith.addf %38, %49 : vector<32x128xf32>
    %c4 = arith.constant 4 : index
    %51 = memref.load %arg1[%c4] : memref<31xf32, #tpu.memory_space<smem>>
    %c14 = arith.constant 14 : index
    %52 = memref.load %arg1[%c14] : memref<31xf32, #tpu.memory_space<smem>>
    %c24 = arith.constant 24 : index
    %53 = memref.load %arg1[%c24] : memref<31xf32, #tpu.memory_space<smem>>
    %54 = vector.broadcast %51 : f32 to vector<32x128xf32>
    %55 = arith.mulf %54, %0 : vector<32x128xf32>
    %56 = vector.broadcast %52 : f32 to vector<32x128xf32>
    %57 = arith.addf %55, %56 : vector<32x128xf32>
    %cst_5 = arith.constant 0.000000e+00 : f32
    %58 = vector.broadcast %cst_5 : f32 to vector<32x128xf32>
    %59 = arith.maximumf %57, %58 : vector<32x128xf32>
    %60 = vector.broadcast %53 : f32 to vector<32x128xf32>
    %61 = arith.mulf %60, %59 : vector<32x128xf32>
    %62 = arith.addf %50, %61 : vector<32x128xf32>
    %c5 = arith.constant 5 : index
    %63 = memref.load %arg1[%c5] : memref<31xf32, #tpu.memory_space<smem>>
    %c15 = arith.constant 15 : index
    %64 = memref.load %arg1[%c15] : memref<31xf32, #tpu.memory_space<smem>>
    %c25 = arith.constant 25 : index
    %65 = memref.load %arg1[%c25] : memref<31xf32, #tpu.memory_space<smem>>
    %66 = vector.broadcast %63 : f32 to vector<32x128xf32>
    %67 = arith.mulf %66, %0 : vector<32x128xf32>
    %68 = vector.broadcast %64 : f32 to vector<32x128xf32>
    %69 = arith.addf %67, %68 : vector<32x128xf32>
    %cst_6 = arith.constant 0.000000e+00 : f32
    %70 = vector.broadcast %cst_6 : f32 to vector<32x128xf32>
    %71 = arith.maximumf %69, %70 : vector<32x128xf32>
    %72 = vector.broadcast %65 : f32 to vector<32x128xf32>
    %73 = arith.mulf %72, %71 : vector<32x128xf32>
    %74 = arith.addf %62, %73 : vector<32x128xf32>
    %c6 = arith.constant 6 : index
    %75 = memref.load %arg1[%c6] : memref<31xf32, #tpu.memory_space<smem>>
    %c16 = arith.constant 16 : index
    %76 = memref.load %arg1[%c16] : memref<31xf32, #tpu.memory_space<smem>>
    %c26 = arith.constant 26 : index
    %77 = memref.load %arg1[%c26] : memref<31xf32, #tpu.memory_space<smem>>
    %78 = vector.broadcast %75 : f32 to vector<32x128xf32>
    %79 = arith.mulf %78, %0 : vector<32x128xf32>
    %80 = vector.broadcast %76 : f32 to vector<32x128xf32>
    %81 = arith.addf %79, %80 : vector<32x128xf32>
    %cst_7 = arith.constant 0.000000e+00 : f32
    %82 = vector.broadcast %cst_7 : f32 to vector<32x128xf32>
    %83 = arith.maximumf %81, %82 : vector<32x128xf32>
    %84 = vector.broadcast %77 : f32 to vector<32x128xf32>
    %85 = arith.mulf %84, %83 : vector<32x128xf32>
    %86 = arith.addf %74, %85 : vector<32x128xf32>
    %c7 = arith.constant 7 : index
    %87 = memref.load %arg1[%c7] : memref<31xf32, #tpu.memory_space<smem>>
    %c17 = arith.constant 17 : index
    %88 = memref.load %arg1[%c17] : memref<31xf32, #tpu.memory_space<smem>>
    %c27 = arith.constant 27 : index
    %89 = memref.load %arg1[%c27] : memref<31xf32, #tpu.memory_space<smem>>
    %90 = vector.broadcast %87 : f32 to vector<32x128xf32>
    %91 = arith.mulf %90, %0 : vector<32x128xf32>
    %92 = vector.broadcast %88 : f32 to vector<32x128xf32>
    %93 = arith.addf %91, %92 : vector<32x128xf32>
    %cst_8 = arith.constant 0.000000e+00 : f32
    %94 = vector.broadcast %cst_8 : f32 to vector<32x128xf32>
    %95 = arith.maximumf %93, %94 : vector<32x128xf32>
    %96 = vector.broadcast %89 : f32 to vector<32x128xf32>
    %97 = arith.mulf %96, %95 : vector<32x128xf32>
    %98 = arith.addf %86, %97 : vector<32x128xf32>
    %c8 = arith.constant 8 : index
    %99 = memref.load %arg1[%c8] : memref<31xf32, #tpu.memory_space<smem>>
    %c18 = arith.constant 18 : index
    %100 = memref.load %arg1[%c18] : memref<31xf32, #tpu.memory_space<smem>>
    %c28 = arith.constant 28 : index
    %101 = memref.load %arg1[%c28] : memref<31xf32, #tpu.memory_space<smem>>
    %102 = vector.broadcast %99 : f32 to vector<32x128xf32>
    %103 = arith.mulf %102, %0 : vector<32x128xf32>
    %104 = vector.broadcast %100 : f32 to vector<32x128xf32>
    %105 = arith.addf %103, %104 : vector<32x128xf32>
    %cst_9 = arith.constant 0.000000e+00 : f32
    %106 = vector.broadcast %cst_9 : f32 to vector<32x128xf32>
    %107 = arith.maximumf %105, %106 : vector<32x128xf32>
    %108 = vector.broadcast %101 : f32 to vector<32x128xf32>
    %109 = arith.mulf %108, %107 : vector<32x128xf32>
    %110 = arith.addf %98, %109 : vector<32x128xf32>
    %c9 = arith.constant 9 : index
    %111 = memref.load %arg1[%c9] : memref<31xf32, #tpu.memory_space<smem>>
    %c19 = arith.constant 19 : index
    %112 = memref.load %arg1[%c19] : memref<31xf32, #tpu.memory_space<smem>>
    %c29 = arith.constant 29 : index
    %113 = memref.load %arg1[%c29] : memref<31xf32, #tpu.memory_space<smem>>
    %114 = vector.broadcast %111 : f32 to vector<32x128xf32>
    %115 = arith.mulf %114, %0 : vector<32x128xf32>
    %116 = vector.broadcast %112 : f32 to vector<32x128xf32>
    %117 = arith.addf %115, %116 : vector<32x128xf32>
    %cst_10 = arith.constant 0.000000e+00 : f32
    %118 = vector.broadcast %cst_10 : f32 to vector<32x128xf32>
    %119 = arith.maximumf %117, %118 : vector<32x128xf32>
    %120 = vector.broadcast %113 : f32 to vector<32x128xf32>
    %121 = arith.mulf %120, %119 : vector<32x128xf32>
    %122 = arith.addf %110, %121 : vector<32x128xf32>
    %c0_11 = arith.constant 0 : index
    %c0_12 = arith.constant 0 : index
    %123 = vector.load %arg3[%c0_11, %c0_12] : memref<32x128xf32, #tpu.memory_space<vmem>>, vector<32x128xf32>
    tpu.vector_store %arg3[%c0_11, %c0_12], %122 {strides = array<i32>} : memref<32x128xf32, #tpu.memory_space<vmem>>, vector<32x128xf32>,
    return
  }
  func.func @transform_0(%arg0: i32, %arg1: memref<31xf32, #tpu.memory_space<smem>>) -> (i32, i32) {
    %c0_i32 = arith.constant 0 : i32
    %c0_i32_0 = arith.constant 0 : i32
    return %arg0, %c0_i32 : i32, i32
  }
  func.func @transform_1(%arg0: i32, %arg1: memref<31xf32, #tpu.memory_space<smem>>) -> (i32, i32) {
    %c0_i32 = arith.constant 0 : i32
    %c0_i32_0 = arith.constant 0 : i32
    return %arg0, %c0_i32 : i32, i32
  }
}

</mosaic_0001>

<llo_original>
// kernel: tpu_custom_call.1
$region0: #{tpu_custom_call.1}
  #allocation0 [shape = 'u32[]', space=smem, size = 0x4, offset = 0x4, fixed_abs, tag = 'smem constant byte address 0x4 - core index']
  #allocation1 [shape = 'u32[144,128]{1,0:T(1,128)}', space=vmem, size = 0x12000, scoped, tag = 'internal scratch']
  #allocation2 [shape = 's32[1]{0}', space=sflag, size = 0x4, scoped, tag = 'scoped memory for tpu_custom_call.1']
  #allocation3 [shape = 'u8[512]{0}', space=smem, size = 0x200, scoped, tag = 'prefetched SMEM operand 0']
  %s0 = inlined_call_operand.hbm [shape: f32[31], index: 0, kind: input, shape index: {}]
  %s1 = inlined_call_operand.hbm [shape: f32[32,128], index: 1, kind: input, shape index: {}]
  %s2 = inlined_call_operand.hbm [shape: f32[32,128], index: 2, kind: output, shape index: {}]
  %s3 = sld [smem:[#allocation0]]
  $region18: #{tpu_custom_call.1} parent=0
    _
  %s5 = ssub.s32 1, %s3
  %s6 = scalar_select 0, %s5, %s3
  %8 = dma.hbm_to_smem %s0, 16, [#allocation3], [#allocation2]
  %9 = dma.done [#allocation2], 16
  %10 = sfence
  $region1: #{tpu_custom_call.1} parent=0
    #allocation4 [shape = 'u8[16384]{0}', space=vmem, size = 0x4000, scoped, tag = 'input window, operand 1, single buffered']
    #allocation5 [shape = 's32[1]{0}', space=sflag, size = 0x4, scoped, tag = 'scoped memory for tpu_custom_call.1']
    #allocation6 [shape = 's32[1]{0}', space=sflag, size = 0x4, scoped, tag = 'scoped memory for tpu_custom_call.1']
    #allocation7 [shape = 'u8[16384]{0}', space=vmem, size = 0x4000, scoped, tag = 'output window, operand 0, single buffered']
    %11 = vsyncpa [#allocation5], 0
    %12 = vsyncpa [#allocation6], 0
    // Predicated region
    $region2: #{tpu_custom_call.1} parent=1 // pred_check
      _
    $region3: #{tpu_custom_call.1} parent=1 // pred_check_branch
      %14 = sbr.rel (0) target = $region5
    $region4: #{tpu_custom_call.1} parent=1 // pred_region
      %s16 = ssub.s32 512, 512
      %17 = vsyncadd [#allocation5], %s16
      %s18 = sshll.u32 [#allocation4], 4
      %s19 = int_to_ptr.vmem [resolvable:$true] %s18
      %24 = dma.hbm_to_vmem [thread:$0]  %s1, 512, %s19, [#allocation5], 128, 128, 8
    $region5: #{tpu_custom_call.1} parent=1 // pred_fallthru
      _
    // Predicated region
    $region6: #{tpu_custom_call.1} parent=1 // pred_check
      _
    $region7: #{tpu_custom_call.1} parent=1 // pred_check_branch
      %26 = sbr.rel (0) target = $region9
    $region8: #{tpu_custom_call.1} parent=1 // pred_region
      %27 = dma.done [#allocation5], 512
    $region9: #{tpu_custom_call.1} parent=1 // pred_fallthru
      _
    %v28 = vld [vmem:[#allocation4] sm:$0xff]
    %v29 = vld [vmem:[#allocation4 + $0x8] sm:$0xff]
    %v30 = vld [vmem:[#allocation4 + $0x10] sm:$0xff]
    %v31 = vld [vmem:[#allocation4 + $0x18] sm:$0xff]
    %s32 = sld [smem:[#allocation3 + $0x1e]]
    %v33 = vstv %s32
    %s34 = sld [smem:[#allocation3]]
    %s35 = sld [smem:[#allocation3 + $0xa]]
    %s36 = sld [smem:[#allocation3 + $0x14]]
    %v37 = vstv %s34
    %v38 = vmul.f32 %v37, %v28
    %v39 = vmul.f32 %v37, %v29
    %v40 = vmul.f32 %v37, %v30
    %v41 = vmul.f32 %v37, %v31
    %v42 = vstv %s35
    %v43 = vadd.f32 %v38, %v42
    %v44 = vadd.f32 %v39, %v42
    %v45 = vadd.f32 %v40, %v42
    %v46 = vadd.f32 %v41, %v42
    %v47 = vmax.f32 %v43, 0.0
    %v48 = vmax.f32 %v44, 0.0
    %v49 = vmax.f32 %v45, 0.0
    %v50 = vmax.f32 %v46, 0.0
    %v51 = vstv %s36
    %v52 = vmul.f32 %v51, %v47
    %v53 = vmul.f32 %v51, %v48
    %v54 = vmul.f32 %v51, %v49
    %v55 = vmul.f32 %v51, %v50
    %v56 = vadd.f32 %v33, %v52
    %v57 = vadd.f32 %v33, %v53
    %v58 = vadd.f32 %v33, %v54
    %v59 = vadd.f32 %v33, %v55
    %s60 = sld [smem:[#allocation3 + $0x1]]
    %s61 = sld [smem:[#allocation3 + $0xb]]
    %s62 = sld [smem:[#allocation3 + $0x15]]
    %v63 = vstv %s60
    %v64 = vmul.f32 %v63, %v28
    %v65 = vmul.f32 %v63, %v29
    %v66 = vmul.f32 %v63, %v30
    %v67 = vmul.f32 %v63, %v31
    %v68 = vstv %s61
    %v69 = vadd.f32 %v64, %v68
    %v70 = vadd.f32 %v65, %v68
    %v71 = vadd.f32 %v66, %v68
    %v72 = vadd.f32 %v67, %v68
    %v73 = vmax.f32 %v69, 0.0
    %v74 = vmax.f32 %v70, 0.0
    %v75 = vmax.f32 %v71, 0.0
    %v76 = vmax.f32 %v72, 0.0
    %v77 = vstv %s62
    %v78 = vmul.f32 %v77, %v73
    %v79 = vmul.f32 %v77, %v74
    %v80 = vmul.f32 %v77, %v75
    %v81 = vmul.f32 %v77, %v76
    %v82 = vadd.f32 %v56, %v78
    %v83 = vadd.f32 %v57, %v79
    %v84 = vadd.f32 %v58, %v80
    %v85 = vadd.f32 %v59, %v81
    %s86 = sld [smem:[#allocation3 + $0x2]]
    %s87 = sld [smem:[#allocation3 + $0xc]]
    %s88 = sld [smem:[#allocation3 + $0x16]]
    %v89 = vstv %s86
    %v90 = vmul.f32 %v89, %v28
    %v91 = vmul.f32 %v89, %v29
    %v92 = vmul.f32 %v89, %v30
    %v93 = vmul.f32 %v89, %v31
    %v94 = vstv %s87
    %v95 = vadd.f32 %v90, %v94
    %v96 = vadd.f32 %v91, %v94
    %v97 = vadd.f32 %v92, %v94
    %v98 = vadd.f32 %v93, %v94
    %v99 = vmax.f32 %v95, 0.0
    %v100 = vmax.f32 %v96, 0.0
    %v101 = vmax.f32 %v97, 0.0
    %v102 = vmax.f32 %v98, 0.0
    %v103 = vstv %s88
    %v104 = vmul.f32 %v103, %v99
    %v105 = vmul.f32 %v103, %v100
    %v106 = vmul.f32 %v103, %v101
    %v107 = vmul.f32 %v103, %v102
    %v108 = vadd.f32 %v82, %v104
    %v109 = vadd.f32 %v83, %v105
    %v110 = vadd.f32 %v84, %v106
    %v111 = vadd.f32 %v85, %v107
    %s112 = sld [smem:[#allocation3 + $0x3]]
    %s113 = sld [smem:[#allocation3 + $0xd]]
    %s114 = sld [smem:[#allocation3 + $0x17]]
    %v115 = vstv %s112
    %v116 = vmul.f32 %v115, %v28
    %v117 = vmul.f32 %v115, %v29
    %v118 = vmul.f32 %v115, %v30
    %v119 = vmul.f32 %v115, %v31
    %v120 = vstv %s113
    %v121 = vadd.f32 %v116, %v120
    %v122 = vadd.f32 %v117, %v120
    %v123 = vadd.f32 %v118, %v120
    %v124 = vadd.f32 %v119, %v120
    %v125 = vmax.f32 %v121, 0.0
    %v126 = vmax.f32 %v122, 0.0
    %v127 = vmax.f32 %v123, 0.0
    %v128 = vmax.f32 %v124, 0.0
    %v129 = vstv %s114
    %v130 = vmul.f32 %v129, %v125
    %v131 = vmul.f32 %v129, %v126
    %v132 = vmul.f32 %v129, %v127
    %v133 = vmul.f32 %v129, %v128
    %v134 = vadd.f32 %v108, %v130
    %v135 = vadd.f32 %v109, %v131
    %v136 = vadd.f32 %v110, %v132
    %v137 = vadd.f32 %v111, %v133
    %s138 = sld [smem:[#allocation3 + $0x4]]
    %s139 = sld [smem:[#allocation3 + $0xe]]
    %s140 = sld [smem:[#allocation3 + $0x18]]
    %v141 = vstv %s138
    %v142 = vmul.f32 %v141, %v28
    %v143 = vmul.f32 %v141, %v29
    %v144 = vmul.f32 %v141, %v30
    %v145 = vmul.f32 %v141, %v31
    %v146 = vstv %s139
    %v147 = vadd.f32 %v142, %v146
    %v148 = vadd.f32 %v143, %v146
    %v149 = vadd.f32 %v144, %v146
    %v150 = vadd.f32 %v145, %v146
    %v151 = vmax.f32 %v147, 0.0
    %v152 = vmax.f32 %v148, 0.0
    %v153 = vmax.f32 %v149, 0.0
    %v154 = vmax.f32 %v150, 0.0
    %v155 = vstv %s140
    %v156 = vmul.f32 %v155, %v151
    %v157 = vmul.f32 %v155, %v152
    %v158 = vmul.f32 %v155, %v153
    %v159 = vmul.f32 %v155, %v154
    %v160 = vadd.f32 %v134, %v156
    %v161 = vadd.f32 %v135, %v157
    %v162 = vadd.f32 %v136, %v158
    %v163 = vadd.f32 %v137, %v159
    %s164 = sld [smem:[#allocation3 + $0x5]]
    %s165 = sld [smem:[#allocation3 + $0xf]]
    %s166 = sld [smem:[#allocation3 + $0x19]]
    %v167 = vstv %s164
    %v168 = vmul.f32 %v167, %v28
    %v169 = vmul.f32 %v167, %v29
    %v170 = vmul.f32 %v167, %v30
    %v171 = vmul.f32 %v167, %v31
    %v172 = vstv %s165
    %v173 = vadd.f32 %v168, %v172
    %v174 = vadd.f32 %v169, %v172
    %v175 = vadd.f32 %v170, %v172
    %v176 = vadd.f32 %v171, %v172
    %v177 = vmax.f32 %v173, 0.0
    %v178 = vmax.f32 %v174, 0.0
    %v179 = vmax.f32 %v175, 0.0
    %v180 = vmax.f32 %v176, 0.0
    %v181 = vstv %s166
    %v182 = vmul.f32 %v181, %v177
    %v183 = vmul.f32 %v181, %v178
    %v184 = vmul.f32 %v181, %v179
    %v185 = vmul.f32 %v181, %v180
    %v186 = vadd.f32 %v160, %v182
    %v187 = vadd.f32 %v161, %v183
    %v188 = vadd.f32 %v162, %v184
    %v189 = vadd.f32 %v163, %v185
    %s190 = sld [smem:[#allocation3 + $0x6]]
    %s191 = sld [smem:[#allocation3 + $0x10]]
    %s192 = sld [smem:[#allocation3 + $0x1a]]
    %v193 = vstv %s190
    %v194 = vmul.f32 %v193, %v28
    %v195 = vmul.f32 %v193, %v29
    %v196 = vmul.f32 %v193, %v30
    %v197 = vmul.f32 %v193, %v31
    %v198 = vstv %s191
    %v199 = vadd.f32 %v194, %v198
    %v200 = vadd.f32 %v195, %v198
    %v201 = vadd.f32 %v196, %v198
    %v202 = vadd.f32 %v197, %v198
    %v203 = vmax.f32 %v199, 0.0
    %v204 = vmax.f32 %v200, 0.0
    %v205 = vmax.f32 %v201, 0.0
    %v206 = vmax.f32 %v202, 0.0
    %v207 = vstv %s192
    %v208 = vmul.f32 %v207, %v203
    %v209 = vmul.f32 %v207, %v204
    %v210 = vmul.f32 %v207, %v205
    %v211 = vmul.f32 %v207, %v206
    %v212 = vadd.f32 %v186, %v208
    %v213 = vadd.f32 %v187, %v209
    %v214 = vadd.f32 %v188, %v210
    %v215 = vadd.f32 %v189, %v211
    %s216 = sld [smem:[#allocation3 + $0x7]]
    %s217 = sld [smem:[#allocation3 + $0x11]]
    %s218 = sld [smem:[#allocation3 + $0x1b]]
    %v219 = vstv %s216
    %v220 = vmul.f32 %v219, %v28
    %v221 = vmul.f32 %v219, %v29
    %v222 = vmul.f32 %v219, %v30
    %v223 = vmul.f32 %v219, %v31
    %v224 = vstv %s217
    %v225 = vadd.f32 %v220, %v224
    %v226 = vadd.f32 %v221, %v224
    %v227 = vadd.f32 %v222, %v224
    %v228 = vadd.f32 %v223, %v224
    %v229 = vmax.f32 %v225, 0.0
    %v230 = vmax.f32 %v226, 0.0
    %v231 = vmax.f32 %v227, 0.0
    %v232 = vmax.f32 %v228, 0.0
    %v233 = vstv %s218
    %v234 = vmul.f32 %v233, %v229
    %v235 = vmul.f32 %v233, %v230
    %v236 = vmul.f32 %v233, %v231
    %v237 = vmul.f32 %v233, %v232
    %v238 = vadd.f32 %v212, %v234
    %v239 = vadd.f32 %v213, %v235
    %v240 = vadd.f32 %v214, %v236
    %v241 = vadd.f32 %v215, %v237
    %s242 = sld [smem:[#allocation3 + $0x8]]
    %s243 = sld [smem:[#allocation3 + $0x12]]
    %s244 = sld [smem:[#allocation3 + $0x1c]]
    %v245 = vstv %s242
    %v246 = vmul.f32 %v245, %v28
    %v247 = vmul.f32 %v245, %v29
    %v248 = vmul.f32 %v245, %v30
    %v249 = vmul.f32 %v245, %v31
    %v250 = vstv %s243
    %v251 = vadd.f32 %v246, %v250
    %v252 = vadd.f32 %v247, %v250
    %v253 = vadd.f32 %v248, %v250
    %v254 = vadd.f32 %v249, %v250
    %v255 = vmax.f32 %v251, 0.0
    %v256 = vmax.f32 %v252, 0.0
    %v257 = vmax.f32 %v253, 0.0
    %v258 = vmax.f32 %v254, 0.0
    %v259 = vstv %s244
    %v260 = vmul.f32 %v259, %v255
    %v261 = vmul.f32 %v259, %v256
    %v262 = vmul.f32 %v259, %v257
    %v263 = vmul.f32 %v259, %v258
    %v264 = vadd.f32 %v238, %v260
    %v265 = vadd.f32 %v239, %v261
    %v266 = vadd.f32 %v240, %v262
    %v267 = vadd.f32 %v241, %v263
    %s268 = sld [smem:[#allocation3 + $0x9]]
    %s269 = sld [smem:[#allocation3 + $0x13]]
    %s270 = sld [smem:[#allocation3 + $0x1d]]
    %v271 = vstv %s268
    %v272 = vmul.f32 %v271, %v28
    %v273 = vmul.f32 %v271, %v29
    %v274 = vmul.f32 %v271, %v30
    %v275 = vmul.f32 %v271, %v31
    %v276 = vstv %s269
    %v277 = vadd.f32 %v272, %v276
    %v278 = vadd.f32 %v273, %v276
    %v279 = vadd.f32 %v274, %v276
    %v280 = vadd.f32 %v275, %v276
    %v281 = vmax.f32 %v277, 0.0
    %v282 = vmax.f32 %v278, 0.0
    %v283 = vmax.f32 %v279, 0.0
    %v284 = vmax.f32 %v280, 0.0
    %v285 = vstv %s270
    %v286 = vmul.f32 %v285, %v281
    %v287 = vmul.f32 %v285, %v282
    %v288 = vmul.f32 %v285, %v283
    %v289 = vmul.f32 %v285, %v284
    %v290 = vadd.f32 %v264, %v286
    %v291 = vadd.f32 %v265, %v287
    %v292 = vadd.f32 %v266, %v288
    %v293 = vadd.f32 %v267, %v289
    %294 = vst [vmem:[#allocation7] sm:$0xff] %v290
    %295 = vst [vmem:[#allocation7 + $0x8] sm:$0xff] %v291
    %296 = vst [vmem:[#allocation7 + $0x10] sm:$0xff] %v292
    %297 = vst [vmem:[#allocation7 + $0x18] sm:$0xff] %v293
    // Predicated region
    $region10: #{tpu_custom_call.1} parent=1 // pred_check
      _
    $region11: #{tpu_custom_call.1} parent=1 // pred_check_branch
      %299 = sbr.rel (0) target = $region13
    $region12: #{tpu_custom_call.1} parent=1 // pred_region
      %s301 = ssub.s32 512, 512
      %302 = vsyncadd [#allocation6], %s301
      %s303 = sshll.u32 [#allocation7], 4
      %s304 = int_to_ptr.vmem [resolvable:$true] %s303
      %309 = dma.vmem_to_hbm [thread:$0]  %s304, 512, %s2, [#allocation6], 128, 128, 8
    $region13: #{tpu_custom_call.1} parent=1 // pred_fallthru
      _
    // Predicated region
    $region14: #{tpu_custom_call.1} parent=1 // pred_check
      _
    $region15: #{tpu_custom_call.1} parent=1 // pred_check_branch
      %311 = sbr.rel (0) target = $region17
    $region16: #{tpu_custom_call.1} parent=1 // pred_region
      %312 = dma.done [#allocation6], 512
    $region17: #{tpu_custom_call.1} parent=1 // pred_fallthru
      _
    %313 = vsyncpa [#allocation5], 1
    %314 = vsyncpa [#allocation6], 1

</llo_original>
